<compile_context>
chip_gen: v5e
topology: v5e:2x2
jax: 0.10.0
libtpu: 0.0.40
codegen_flags: <defaults>
</compile_context>

<pallas_src>
import functools

import jax
import jax.numpy as jnp
from jax import lax
from jax.experimental import pallas as pl
from jax.experimental.pallas import tpu as pltpu


_LANES = 128
_SUBLANES = 8
_TARGET_BLOCK_BYTES = 4 * 1024 * 1024   # ~4 MiB per input strip
_MAX_TR = 16384                         # caps double-buffered footprint for v7x (64 MiB VMEM)


def _masked_l1_kernel(p_ref, t_ref, sum_ref, cnt_ref, *,
                      tr, spc, rows_arr, needs_mask):
    c = pl.program_id(0)   # parallel chunk axis (per-TensorCore on v7x)
    i = pl.program_id(1)   # sequential reduction axis within the chunk

    @pl.when(i == 0)
    def _():
        sum_ref[...] = jnp.zeros_like(sum_ref)
        cnt_ref[...] = jnp.zeros_like(cnt_ref)

    # Native-dtype on the wire; upcast on the VPU (hidden under DMA).
    t = t_ref[...].astype(jnp.float32)
    p = p_ref[...].astype(jnp.float32)

    valid = t > 0.0
    if needs_mask:
        # Logical global row id; clamped/overshoot and partial-strip rows are
        # masked out (garbage reads, incl. NaN, are excluded by the where).
        base = (c * spc + i) * tr
        gid = lax.broadcasted_iota(jnp.int32, (tr, _LANES), 0) + base
        valid = jnp.logical_and(valid, gid < rows_arr)

    absdiff = jnp.where(valid, jnp.abs(t - p), 0.0)
    m = valid.astype(jnp.float32)

    # Sublane-group reduction (tr, 128) -> (8, 128): a chain of vadds into the
    # resident output accumulator; no per-step cross-lane reduce or (1,1) RMW.
    sum_ref[...] += jnp.sum(absdiff.reshape(tr // _SUBLANES, _SUBLANES, _LANES), axis=0)
    cnt_ref[...] += jnp.sum(m.reshape(tr // _SUBLANES, _SUBLANES, _LANES), axis=0)


def _round_up(x, m):
    return ((x + m - 1) // m) * m


@functools.partial(jax.jit, static_argnames=("block_rows",))
def masked_l1_loss(depth_input, depth_prediction, depth_target, epoch=None,
                   *, block_rows=None):
    """Pallas implementation of MaskedL1Loss.forward.

    depth_input / epoch are accepted for signature fidelity but unused
    (exactly as in the PyTorch module).  Returns a scalar f32 loss.
    `block_rows` optionally overrides the row-strip height (testing).
    """
    del depth_input, epoch
    assert depth_prediction.ndim == depth_target.ndim, "inconsistent dimensions"
    assert depth_prediction.shape == depth_target.shape, "inconsistent dimensions"

    p = depth_prediction.reshape(-1)
    t = depth_target.reshape(-1)
    n = t.shape[0]

    rows = n // _LANES
    n_aligned = rows * _LANES

    # Sub-row ragged tail (< 128 elements): reduce in plain jnp, no pad copy.
    # TODO(synk): when n % 128 != 0 the aligned slice below may still copy; this
    # only happens for depth maps whose element count is not a multiple of 128.
    if n_aligned < n:
        pt = p[n_aligned:].astype(jnp.float32)
        tt = t[n_aligned:].astype(jnp.float32)
        tail_valid = tt > 0.0
        tail_sum = jnp.sum(jnp.where(tail_valid, jnp.abs(tt - pt), 0.0))
        tail_cnt = jnp.sum(tail_valid.astype(jnp.float32))
    else:
        tail_sum = jnp.float32(0.0)
        tail_cnt = jnp.float32(0.0)

    if rows == 0:
        # Fewer than 128 elements total: everything was handled in the tail.
        return tail_sum / tail_cnt

    p2 = p[:n_aligned].reshape(rows, _LANES)
    t2 = t[:n_aligned].reshape(rows, _LANES)

    # Sublane alignment: pad rows to a multiple of 8 only when needed (rare for
    # real depth-map shapes).  Padded target rows are 0 -> excluded by the mask.
    rows_arr = _round_up(rows, _SUBLANES)
    if rows_arr != rows:
        p2 = jnp.pad(p2, ((0, rows_arr - rows), (0, 0)))
        t2 = jnp.pad(t2, ((0, rows_arr - rows), (0, 0)))

    itemsize = max(p2.dtype.itemsize, t2.dtype.itemsize)
    if block_rows is None:
        target_rows = max(_SUBLANES, min(_MAX_TR, _TARGET_BLOCK_BYTES // (_LANES * itemsize)))
    else:
        target_rows = max(_SUBLANES, block_rows)
    tr = min(_round_up(target_rows, _SUBLANES), rows_arr)

    total_steps = pl.cdiv(rows_arr, tr)
    n_chunks = min(2, total_steps)            # up to one chunk per TensorCore (v7x has 2)
    spc = pl.cdiv(total_steps, n_chunks)      # steps per chunk

    # Row mask only needed if the last strip is partial or a chunk overshoots.
    needs_mask = (rows_arr % tr != 0) or (n_chunks * spc != total_steps)

    def in_index_map(c, i):
        # Clamp overshoot logical blocks onto a valid block; the in-kernel row
        # mask zeroes their contribution.
        return (jnp.minimum(c * spc + i, total_steps - 1), 0)

    kernel = functools.partial(_masked_l1_kernel, tr=tr, spc=spc,
                               rows_arr=rows_arr, needs_mask=needs_mask)

    sum_out, cnt_out = pl.pallas_call(
        kernel,
        out_shape=(jax.ShapeDtypeStruct((n_chunks * _SUBLANES, _LANES), jnp.float32),
                   jax.ShapeDtypeStruct((n_chunks * _SUBLANES, _LANES), jnp.float32)),
        grid_spec=pltpu.PrefetchScalarGridSpec(
            num_scalar_prefetch=0,
            grid=(n_chunks, spc),
            in_specs=[
                pl.BlockSpec((tr, _LANES), in_index_map),   # prediction strip
                pl.BlockSpec((tr, _LANES), in_index_map),   # target strip
            ],
            out_specs=[
                pl.BlockSpec((_SUBLANES, _LANES), lambda c, i: (c, 0)),  # partial sums
                pl.BlockSpec((_SUBLANES, _LANES), lambda c, i: (c, 0)),  # partial counts
            ],
        ),
        compiler_params=pltpu.CompilerParams(
            dimension_semantics=("parallel", "arbitrary"),
            vmem_limit_bytes=48 * 1024 * 1024,
        ),
    )(p2, t2)

    # TODO(synk): counts are f32; exact only up to ~2^24 valid pixels per lane
    # and ~2^24 after the final reduce for pathologically huge inputs.
    total_sum = jnp.sum(sum_out) + tail_sum
    total_cnt = jnp.sum(cnt_out) + tail_cnt
    return total_sum / total_cnt


def reference_masked_l1(depth_prediction, depth_target):
    mask = depth_target > 0
    diff = jnp.where(mask, jnp.abs(depth_target - depth_prediction), 0.0)
    return jnp.sum(diff) / jnp.sum(mask)


if __name__ == "__main__":
    key = jax.random.PRNGKey(0)

    def make_case(k, shape):
        k_in, k_pred, k_tgt = jax.random.split(k, 3)
        depth_input = jax.random.normal(k_in, shape, jnp.float32)     # unused by the loss
        depth_prediction = jax.random.normal(k_pred, shape, jnp.float32)
        raw = jax.random.normal(k_tgt, shape, jnp.float32)
        depth_target = jnp.where(raw > 0, raw, 0.0)                   # ~half the pixels invalid
        return depth_input, depth_prediction, depth_target

    k1, k2, k3 = jax.random.split(key, 3)

    # Case 1: canonical small depth map (single-strip path).
    di, dp, dt = make_case(k1, (2, 1, 16, 16))
    loss = jax.block_until_ready(masked_l1_loss(di, dp, dt))
    ref = jax.block_until_ready(reference_masked_l1(dp, dt))
    assert loss.shape == (), loss.shape
    assert jnp.allclose(loss, ref, rtol=1e-5, atol=1e-6), (float(loss), float(ref))

    # Case 2: multi-step pipeline + 2-chunk parallel split + clamped overshoot
    # block + in-kernel row mask (small block_rows keeps shapes tiny).
    di, dp, dt = make_case(k2, (2, 1, 40, 128))
    loss = jax.block_until_ready(masked_l1_loss(di, dp, dt, block_rows=16))
    ref = jax.block_until_ready(reference_masked_l1(dp, dt))
    assert jnp.allclose(loss, ref, rtol=1e-5, atol=1e-6), (float(loss), float(ref))

    # Case 3: ragged element count (sub-row tail reduced in the wrapper).
    di, dp, dt = make_case(k3, (2, 1, 13, 17))
    loss = jax.block_until_ready(masked_l1_loss(di, dp, dt))
    ref = jax.block_until_ready(reference_masked_l1(dp, dt))
    assert jnp.allclose(loss, ref, rtol=1e-5, atol=1e-6), (float(loss), float(ref))

    print("KERNEL_OK")
</pallas_src>

<mosaic_0001>
module attributes {stable_mosaic.version = 11 : i64} {
  func.func @_masked_l1_kernel(%arg0: i32, %arg1: i32, %arg2: memref<8x128xf32, #tpu.memory_space<vmem>>, %arg3: memref<8x128xf32, #tpu.memory_space<vmem>>, %arg4: memref<8x128xf32, #tpu.memory_space<vmem>>, %arg5: memref<8x128xf32, #tpu.memory_space<vmem>>) attributes {dimension_semantics = [#tpu.dimension_semantics<parallel>, #tpu.dimension_semantics<arbitrary>], iteration_bounds = array<i64: 1, 1>, scalar_prefetch = 0 : i64, scratch_operands = 0 : i64, tpu.core_type = #tpu.core_type<tc>, window_params = [{transform_indices = @transform_0, window_bounds = array<i64: 8, 128>}, {transform_indices = @transform_1, window_bounds = array<i64: 8, 128>}, {transform_indices = @transform_2, window_bounds = array<i64: 8, 128>}, {transform_indices = @transform_3, window_bounds = array<i64: 8, 128>}]} {
    %c0_i32 = arith.constant 0 : i32
    %0 = arith.cmpi eq, %arg1, %c0_i32 : i32
    %1 = arith.extui %0 : i1 to i32
    %c0_i32_0 = arith.constant 0 : i32
    %2 = arith.cmpi ne, %1, %c0_i32_0 : i32
    scf.if %2 {
      %cst_15 = arith.constant 0.000000e+00 : f32
      %23 = vector.broadcast %cst_15 : f32 to vector<8x128xf32>
      %c0_16 = arith.constant 0 : index
      %c0_17 = arith.constant 0 : index
      %24 = vector.load %arg4[%c0_16, %c0_17] : memref<8x128xf32, #tpu.memory_space<vmem>>, vector<8x128xf32>
      tpu.vector_store %arg4[%c0_16, %c0_17], %23 {strides = array<i32>} : memref<8x128xf32, #tpu.memory_space<vmem>>, vector<8x128xf32>,
      %cst_18 = arith.constant 0.000000e+00 : f32
      %25 = vector.broadcast %cst_18 : f32 to vector<8x128xf32>
      %c0_19 = arith.constant 0 : index
      %c0_20 = arith.constant 0 : index
      %26 = vector.load %arg5[%c0_19, %c0_20] : memref<8x128xf32, #tpu.memory_space<vmem>>, vector<8x128xf32>
      tpu.vector_store %arg5[%c0_19, %c0_20], %25 {strides = array<i32>} : memref<8x128xf32, #tpu.memory_space<vmem>>, vector<8x128xf32>,
    } else {
    }
    %c0 = arith.constant 0 : index
    %c0_1 = arith.constant 0 : index
    %3 = vector.load %arg3[%c0, %c0_1] : memref<8x128xf32, #tpu.memory_space<vmem>>, vector<8x128xf32>
    %c0_2 = arith.constant 0 : index
    %c0_3 = arith.constant 0 : index
    %4 = vector.load %arg2[%c0_2, %c0_3] : memref<8x128xf32, #tpu.memory_space<vmem>>, vector<8x128xf32>
    %cst = arith.constant 0.000000e+00 : f32
    %5 = vector.broadcast %cst : f32 to vector<8x128xf32>
    %6 = arith.cmpf ogt, %3, %5 : vector<8x128xf32>
    %7 = arith.subf %3, %4 : vector<8x128xf32>
    %8 = math.absf %7 : vector<8x128xf32>
    %cst_4 = arith.constant 0.000000e+00 : f32
    %9 = vector.broadcast %cst_4 : f32 to vector<8x128xf32>
    %10 = arith.select %6, %8, %9 : vector<8x128xi1>, vector<8x128xf32>
    %11 = arith.extui %6 : vector<8x128xi1> to vector<8x128xi32>
    %12 = arith.sitofp %11 : vector<8x128xi32> to vector<8x128xf32>
    %c0_5 = arith.constant 0 : index
    %c0_6 = arith.constant 0 : index
    %13 = vector.load %arg4[%c0_5, %c0_6] : memref<8x128xf32, #tpu.memory_space<vmem>>, vector<8x128xf32>
    %14 = vector.shape_cast %10 : vector<8x128xf32> to vector<1x8x128xf32>
    %cst_7 = arith.constant dense<0.000000e+00> : vector<8x128xf32>
    %15 = vector.multi_reduction <add>, %14, %cst_7 [0] : vector<1x8x128xf32> to vector<8x128xf32>
    %16 = arith.addf %13, %15 : vector<8x128xf32>
    %c0_8 = arith.constant 0 : index
    %c0_9 = arith.constant 0 : index
    %17 = vector.load %arg4[%c0_8, %c0_9] : memref<8x128xf32, #tpu.memory_space<vmem>>, vector<8x128xf32>
    tpu.vector_store %arg4[%c0_8, %c0_9], %16 {strides = array<i32>} : memref<8x128xf32, #tpu.memory_space<vmem>>, vector<8x128xf32>,
    %c0_10 = arith.constant 0 : index
    %c0_11 = arith.constant 0 : index
    %18 = vector.load %arg5[%c0_10, %c0_11] : memref<8x128xf32, #tpu.memory_space<vmem>>, vector<8x128xf32>
    %19 = vector.shape_cast %12 : vector<8x128xf32> to vector<1x8x128xf32>
    %cst_12 = arith.constant dense<0.000000e+00> : vector<8x128xf32>
    %20 = vector.multi_reduction <add>, %19, %cst_12 [0] : vector<1x8x128xf32> to vector<8x128xf32>
    %21 = arith.addf %18, %20 : vector<8x128xf32>
    %c0_13 = arith.constant 0 : index
    %c0_14 = arith.constant 0 : index
    %22 = vector.load %arg5[%c0_13, %c0_14] : memref<8x128xf32, #tpu.memory_space<vmem>>, vector<8x128xf32>
    tpu.vector_store %arg5[%c0_13, %c0_14], %21 {strides = array<i32>} : memref<8x128xf32, #tpu.memory_space<vmem>>, vector<8x128xf32>,
    return
  }
  func.func @transform_0(%arg0: i32, %arg1: i32) -> (i32, i32) {
    %c1_i32 = arith.constant 1 : i32
    %0 = arith.muli %arg0, %c1_i32 : i32
    %1 = arith.addi %0, %arg1 : i32
    %c0_i32 = arith.constant 0 : i32
    %2 = arith.minsi %1, %c0_i32 : i32
    %c0_i32_0 = arith.constant 0 : i32
    %c0_i32_1 = arith.constant 0 : i32
    return %2, %c0_i32_0 : i32, i32
  }
  func.func @transform_1(%arg0: i32, %arg1: i32) -> (i32, i32) {
    %c1_i32 = arith.constant 1 : i32
    %0 = arith.muli %arg0, %c1_i32 : i32
    %1 = arith.addi %0, %arg1 : i32
    %c0_i32 = arith.constant 0 : i32
    %2 = arith.minsi %1, %c0_i32 : i32
    %c0_i32_0 = arith.constant 0 : i32
    %c0_i32_1 = arith.constant 0 : i32
    return %2, %c0_i32_0 : i32, i32
  }
  func.func @transform_2(%arg0: i32, %arg1: i32) -> (i32, i32) {
    %c0_i32 = arith.constant 0 : i32
    %c0_i32_0 = arith.constant 0 : i32
    return %arg0, %c0_i32 : i32, i32
  }
  func.func @transform_3(%arg0: i32, %arg1: i32) -> (i32, i32) {
    %c0_i32 = arith.constant 0 : i32
    %c0_i32_0 = arith.constant 0 : i32
    return %arg0, %c0_i32 : i32, i32
  }
}

</mosaic_0001>

<llo_original>
// kernel: masked_l1_loss.1
$region0: #{masked_l1_loss.1}
  #allocation0 [shape = 'u32[]', space=smem, size = 0x4, offset = 0x4, fixed_abs, tag = 'smem constant byte address 0x4 - core index']
  #allocation1 [shape = 'u32[72,128]{1,0:T(1,128)}', space=vmem, size = 0x9000, scoped, tag = 'internal scratch']
  %s0 = inlined_call_operand.vmem [shape: f32[8,128], index: 0, kind: input, shape index: {}]
  %s1 = inlined_call_operand.vmem [shape: f32[8,128], index: 1, kind: input, shape index: {}]
  %s2 = inlined_call_operand.vmem [shape: f32[8,128], index: 2, kind: output, shape index: {0}]
  %s3 = inlined_call_operand.vmem [shape: f32[8,128], index: 3, kind: output, shape index: {1}]
  %4 = xla_tuple %s2, %s3
  %s5 = sld [smem:[#allocation0]]
  $region30: #{masked_l1_loss.1} parent=0
    _
  %s7 = ssub.s32 1, %s5
  %s8 = scalar_select 0, %s7, %s5
  // Predicated region
  $region2: #{masked_l1_loss.1} parent=0 // pred_check
    _
  $region3: #{masked_l1_loss.1} parent=0 // pred_check_branch
    %10 = sbr.rel (0) target = $region5
  $region4: #{masked_l1_loss.1} parent=0 // pred_region
    %s11 = sadd.s32 0, 0
    %p12 = scmp.lt.s32.totalorder %s11, 0
    %s13 = scalar_select %p12, %s11, 0
    %p14 = scmp.lt.s32.totalorder %s13, 0
    %s15 = scalar_select %p14, %s13, 0
    %s16 = smul.addr %s15, 8
    %s17 = scalar_lea.vmem %s0, %s16
    %s18 = sadd.s32 0, 0
    %p19 = scmp.lt.s32.totalorder %s18, 0
    %s20 = scalar_select %p19, %s18, 0
  $region5: #{masked_l1_loss.1} parent=0 // pred_fallthru
    _
  // Predicated region
  $region6: #{masked_l1_loss.1} parent=0 // pred_check
    _
  $region7: #{masked_l1_loss.1} parent=0 // pred_check_branch
    %22 = sbr.rel (0) target = $region9
  $region8: #{masked_l1_loss.1} parent=0 // pred_region
    %s23 = sadd.s32 0, 0
    %p24 = scmp.lt.s32.totalorder %s23, 0
    %s25 = scalar_select %p24, %s23, 0
    %p26 = scmp.lt.s32.totalorder %s25, 0
    %s27 = scalar_select %p26, %s25, 0
    %s28 = smul.addr %s27, 8
    %s29 = scalar_lea.vmem %s1, %s28
    %s30 = sadd.s32 0, 0
    %p31 = scmp.lt.s32.totalorder %s30, 0
    %s32 = scalar_select %p31, %s30, 0
  $region9: #{masked_l1_loss.1} parent=0 // pred_fallthru
    _
  %s33 = sadd.s32 0, 0
  %p34 = scmp.lt.s32.totalorder %s33, 0
  %s35 = scalar_select %p34, %s33, 0
  %p36 = scmp.lt.s32.totalorder %s35, 0
  %s37 = scalar_select %p36, %s35, 0
  %s38 = smul.addr %s37, 8
  %s39 = scalar_lea.vmem %s0, %s38
  %s40 = sadd.s32 0, 0
  %p41 = scmp.lt.s32.totalorder %s40, 0
  %s42 = scalar_select %p41, %s40, 0
  %p43 = scmp.lt.s32.totalorder %s42, 0
  %s44 = scalar_select %p43, %s42, 0
  %s45 = smul.addr %s44, 8
  %s46 = scalar_lea.vmem %s1, %s45
  %s47 = sadd.s32 0, 0
  %p48 = scmp.lt.s32.totalorder %s47, 0
  %s49 = scalar_select %p48, %s47, 0
  %p50 = scmp.lt.s32.totalorder %s49, 0
  %s51 = scalar_select %p50, %s49, 0
  %s52 = smul.addr %s51, 8
  %s53 = scalar_lea.vmem %s0, %s52
  %s54 = sadd.s32 0, 0
  %p55 = scmp.lt.s32.totalorder %s54, 0
  %s56 = scalar_select %p55, %s54, 0
  %s57 = sadd.s32 0, 0
  %p58 = scmp.lt.s32.totalorder %s57, 0
  %s59 = scalar_select %p58, %s57, 0
  %p60 = scmp.lt.s32.totalorder %s59, 0
  %s61 = scalar_select %p60, %s59, 0
  %s62 = smul.addr %s61, 8
  %s63 = scalar_lea.vmem %s1, %s62
  %s64 = sadd.s32 0, 0
  %p65 = scmp.lt.s32.totalorder %s64, 0
  %s66 = scalar_select %p65, %s64, 0
  %p67 = scmp.eq.s32.totalorder 0, 0
  // Predicated region
  $region10: #{masked_l1_loss.1} parent=0 // pred_check
    %p68 = pneg %p67
  $region11: #{masked_l1_loss.1} parent=0 // pred_check_branch
    %70 = sbr.rel (%p68) target = $region13
  $region12: #{masked_l1_loss.1} parent=0 // pred_region
    %71 = vst [vmem:[%s2] sm:$0xff] 0.0
    %72 = vst [vmem:[%s3] sm:$0xff] 0.0
  $region13: #{masked_l1_loss.1} parent=0 // pred_fallthru
    _
  %v73 = vld [vmem:[%s63] sm:$0xff]
  %v74 = vld [vmem:[%s53] sm:$0xff]
  %vm75 = vcmp.gt.f32.partialorder %v73, 0.0
  %v76 = vsub.f32 %v73, %v74
  %v77 = vand.u32 2147483647, %v76
  %v78 = vsel %vm75, %v77, 0.0
  %v79 = vsel %vm75, 1, 0
  %v80 = vcvt.s32.f32 %v79
  %v81 = vld [vmem:[%s2] sm:$0xff]
  %v82 = vadd.f32 %v78, 0.0
  %v83 = vadd.f32 %v81, %v82
  %84 = vst [vmem:[%s2] sm:$0xff] %v83
  %v85 = vld [vmem:[%s3] sm:$0xff]
  %v86 = vadd.f32 %v80, 0.0
  %v87 = vadd.f32 %v85, %v86
  %88 = vst [vmem:[%s3] sm:$0xff] %v87
  // Predicated region
  $region14: #{masked_l1_loss.1} parent=0 // pred_check
    _
  $region15: #{masked_l1_loss.1} parent=0 // pred_check_branch
    %90 = sbr.rel (0) target = $region17
  $region16: #{masked_l1_loss.1} parent=0 // pred_region
    _
  $region17: #{masked_l1_loss.1} parent=0 // pred_fallthru
    _
  // Predicated region
  $region18: #{masked_l1_loss.1} parent=0 // pred_check
    _
  $region19: #{masked_l1_loss.1} parent=0 // pred_check_branch
    %92 = sbr.rel (0) target = $region21
  $region20: #{masked_l1_loss.1} parent=0 // pred_region
    _
  $region21: #{masked_l1_loss.1} parent=0 // pred_fallthru
    _
  // Predicated region
  $region22: #{masked_l1_loss.1} parent=0 // pred_check
    _
  $region23: #{masked_l1_loss.1} parent=0 // pred_check_branch
    %94 = sbr.rel (0) target = $region25
  $region24: #{masked_l1_loss.1} parent=0 // pred_region
    _
  $region25: #{masked_l1_loss.1} parent=0 // pred_fallthru
    _
  // Predicated region
  $region26: #{masked_l1_loss.1} parent=0 // pred_check
    _
  $region27: #{masked_l1_loss.1} parent=0 // pred_check_branch
    %96 = sbr.rel (0) target = $region29
  $region28: #{masked_l1_loss.1} parent=0 // pred_region
    _
  $region29: #{masked_l1_loss.1} parent=0 // pred_fallthru
    _

</llo_original>
